<compile_context>
chip_gen: v5e
topology: v5e:2x2
jax: 0.10.0
libtpu: 0.0.40
codegen_flags: <defaults>
</compile_context>

<pallas_src>
import math
import functools

import jax
import jax.numpy as jnp
from jax import lax
from jax.experimental import pallas as pl
from jax.experimental.pallas import tpu as pltpu


def _make_autocorr_kernel(L: int, F_pad: int, top_k: int):
    """Circular cross-correlation + top-k delay aggregation for one lane tile.

    fwd_ref: [2*F_pad, L]  stacked [cos; sin] half-spectrum forward DFT
    inv_ref: [L, 2*F_pad]  stacked [cos | -sin] inverse (w_f and 1/L folded in)
    q/k/v_ref: [L, TN]     seq on sublanes, B*H*D folded onto lanes
    o_ref:   [L, TN]       f32 output tile
    """

    def kernel(fwd_ref, inv_ref, q_ref, k_ref, v_ref, o_ref):
        fwd = fwd_ref[...]                       # [2F, L] f32
        inv = inv_ref[...]                       # [L, 2F] f32

        def rdft(x):                             # [L, TN] -> [2F, TN], one MXU matmul
            return jnp.dot(fwd, x, preferred_element_type=jnp.float32)

        def cross_spec(af, bf):                  # spectrum of A * conj(B), stacked [Re; Im]
            ac, as_ = af[:F_pad], af[F_pad:]     # aligned sublane slices (F_pad % 8 == 0)
            bc, bs = bf[:F_pad], bf[F_pad:]
            rr = ac * bc + as_ * bs              # Re(A conj(B))
            ri = ac * bs - as_ * bc              # Im(A conj(B))
            return jnp.concatenate([rr, ri], axis=0)   # aligned concat -> [2F, TN]

        def irdft(spec):                         # [2F, TN] -> [L, TN], one MXU matmul
            return jnp.dot(inv, spec, preferred_element_type=jnp.float32)

        # --- corr = irfft(rfft(Q) * conj(rfft(K))) ----------------------------
        qf = rdft(q_ref[...].astype(jnp.float32))
        kf = rdft(k_ref[...].astype(jnp.float32))
        corr = irdft(cross_spec(qf, kf))         # [L, TN], stays in vregs

        # --- iterative top-k along delays, fused softmax + sparse-W build -----
        iota = lax.broadcasted_iota(jnp.int32, (L, 1), 0)   # [L,1], broadcast at use
        work = corr
        w_unnorm = jnp.zeros(corr.shape, jnp.float32)
        m0 = None
        denom = None
        for i in range(top_k):                   # top_k ~ log(L): tiny unroll
            m = jnp.max(work, axis=0, keepdims=True)            # [1, TN]  (XLU)
            cand = jnp.where(work == m, iota, jnp.int32(L))
            a = jnp.min(cand, axis=0, keepdims=True)            # first argmax
            sel = iota == a                                     # one-hot mask, reused below
            if i == 0:
                m0 = m
                e = jnp.ones_like(m)                            # exp(m0 - m0) == 1
                denom = e
            else:
                e = jnp.exp(m - m0)                             # [1, TN], EUP
                denom = denom + e
            w_unnorm = w_unnorm + jnp.where(sel, e, 0.0)
            if i + 1 < top_k:                                   # skip the last knockout
                work = jnp.where(sel, jnp.float32(-jnp.inf), work)

        wmat = w_unnorm * (1.0 / denom)          # exact softmax normalisation, [L,TN]*[1,TN]

        # --- out[t, n] = sum_tau W[tau, n] * V[(t + tau) mod L, n] -------------
        # == irfft(rfft(V) * conj(rfft(W))): reuse the DFT machinery.
        vf = rdft(v_ref[...].astype(jnp.float32))   # deferred upcast of V
        wf = rdft(wmat)
        out = irdft(cross_spec(vf, wf))
        o_ref[...] = out.astype(o_ref.dtype)

    return kernel


def _vmem_estimate(L: int, F2: int, TN: int, in_itemsize: int) -> int:
    """Rough VMEM demand for one lane tile (blocks + peak live temporaries)."""
    blocks = 2 * 3 * L * TN * in_itemsize        # Q/K/V tiles, double-buffered
    blocks += 2 * L * TN * 4                     # f32 output tile, double-buffered
    blocks += 2 * 2 * F2 * L * 4                 # FWD + INV (pipeline double-buffers them)
    temps = (8 * L + 6 * F2) * TN * 4            # live f32 spectra / corr / work / W
    return blocks + temps


def _pick_lane_tile(n_pad: int, L: int, F2: int, in_itemsize: int,
                    vmem_budget: int, min_steps: int, max_lanes: int = 4096) -> int:
    """Largest 128-multiple divisor of n_pad fitting the VMEM budget."""
    cands = [t for t in range(128, min(n_pad, max_lanes) + 1, 128) if n_pad % t == 0]
    if not cands:
        return n_pad
    fits = [t for t in cands if _vmem_estimate(L, F2, t, in_itemsize) <= vmem_budget]
    if not fits:
        return cands[0]          # smallest tile; see TODO about K-blocking very large L
    stepped = [t for t in fits if n_pad // t >= min_steps]
    return max(stepped) if stepped else max(fits)


@functools.partial(jax.jit, static_argnames=("factor",))
def autocorrelation_forward(Q, K, V, factor: int = 1):
    """Pallas implementation of AutoCorrelation.forward.

    Q: [B, H, L, D], K/V: [B, H, S, D]  ->  [B, H, L, D] float32
    """
    B, H, L, D = Q.shape
    S = K.shape[2]

    # length alignment glue (matches the torch code)
    if L > S:
        pad = jnp.zeros((B, H, L - S, D), Q.dtype)
        K = jnp.concatenate([K, pad], axis=2)
        V = jnp.concatenate([V, pad], axis=2)
    else:
        K = K[:, :, :L, :]
        V = V[:, :, :L, :]

    top_k = max(1, min(int(factor * math.log(L)), L))

    # --- half-spectrum (rfft-style) DFT matrices, cos/sin merged --------------
    F = L // 2 + 1
    F_pad = ((F + 7) // 8) * 8                   # sublane-aligned half-spectrum rows
    F2 = 2 * F_pad
    f_idx = jnp.arange(F_pad, dtype=jnp.int32)
    t_idx = jnp.arange(L, dtype=jnp.int32)
    valid = (f_idx < F).astype(jnp.float32)      # zero out padding bins
    # exact angles via integer mod (avoids cos of huge arguments for large L)
    ang_ft = (2.0 * math.pi / L) * ((f_idx[:, None] * t_idx[None, :]) % L).astype(jnp.float32)
    fwd = jnp.concatenate([jnp.cos(ang_ft) * valid[:, None],
                           jnp.sin(ang_ft) * valid[:, None]], axis=0)      # [2F_pad, L]
    # Hermitian weights (x2 interior, x1 DC/Nyquist) and the 1/L scale folded in.
    wgt = jnp.where((f_idx == 0) | (f_idx == L // 2), 1.0, 2.0) * valid / float(L)
    ang_tf = (2.0 * math.pi / L) * ((t_idx[:, None] * f_idx[None, :]) % L).astype(jnp.float32)
    inv = jnp.concatenate([jnp.cos(ang_tf) * wgt[None, :],
                           -jnp.sin(ang_tf) * wgt[None, :]], axis=1)       # [L, 2F_pad]

    # --- fold (B, H, D) onto the lane axis and pad to a multiple of 128 -------
    N = B * H * D
    N_pad = ((N + 127) // 128) * 128
    Qf = jnp.moveaxis(Q, 2, 0).reshape(L, N)     # keep original dtype
    Kf = jnp.moveaxis(K, 2, 0).reshape(L, N)
    Vf = jnp.moveaxis(V, 2, 0).reshape(L, N)
    if N_pad != N:
        lane_pad = ((0, 0), (0, N_pad - N))
        Qf = jnp.pad(Qf, lane_pad)
        Kf = jnp.pad(Kf, lane_pad)
        Vf = jnp.pad(Vf, lane_pad)

    # --- generation-aware VMEM budget and lane-tile choice ---------------------
    try:
        phys_vmem = int(pltpu.get_tpu_info().vmem_capacity_bytes)
    except Exception:
        phys_vmem = 64 << 20                     # conservative default (v7x per-core)
    vmem_budget = max(min(phys_vmem, 128 << 20) - (16 << 20), 24 << 20)
    min_steps = 2 if phys_vmem <= (80 << 20) else 1   # keep both v7x TCs busy
    in_itemsize = jnp.dtype(Q.dtype).itemsize

    TN = _pick_lane_tile(N_pad, L, F2, in_itemsize, vmem_budget, min_steps)
    grid = (N_pad // TN,)

    vmem_limit = max(_vmem_estimate(L, F2, TN, in_itemsize) + (2 << 20), 32 << 20)
    vmem_limit = int(min(vmem_limit, min(phys_vmem, 128 << 20) - (4 << 20)))

    cost = pl.CostEstimate(
        flops=int(6 * 2 * F2 * L * N_pad + 40 * L * N_pad),
        transcendentals=int(max(top_k - 1, 1) * N_pad),
        bytes_accessed=int(3 * L * N_pad * in_itemsize + L * N_pad * 4 + 2 * F2 * L * 4),
    )

    kernel = _make_autocorr_kernel(L, F_pad, top_k)

    out = pl.pallas_call(
        kernel,
        out_shape=jax.ShapeDtypeStruct((L, N_pad), jnp.float32),
        grid_spec=pltpu.PrefetchScalarGridSpec(
            num_scalar_prefetch=0,
            grid=grid,
            in_specs=[
                pl.BlockSpec((F2, L), lambda i: (0, 0)),    # FWD (resident)
                pl.BlockSpec((L, F2), lambda i: (0, 0)),    # INV (resident)
                pl.BlockSpec((L, TN), lambda i: (0, i)),    # Q lane tile
                pl.BlockSpec((L, TN), lambda i: (0, i)),    # K lane tile
                pl.BlockSpec((L, TN), lambda i: (0, i)),    # V lane tile
            ],
            out_specs=pl.BlockSpec((L, TN), lambda i: (0, i)),
        ),
        compiler_params=pltpu.CompilerParams(
            dimension_semantics=("parallel",),
            vmem_limit_bytes=vmem_limit,
        ),
        cost_estimate=cost,
    )(fwd, inv, Qf, Kf, Vf)

    out = out[:, :N]
    return jnp.moveaxis(out.reshape(L, B, H, D), 0, 2)       # [B, H, L, D]


def reference_forward(Q, K, V, factor: int = 1):
    """Pure-JAX reference replicating the torch module (FFT path)."""
    B, H, L, D = Q.shape
    S = K.shape[2]
    if L > S:
        pad = jnp.zeros((B, H, L - S, D), Q.dtype)
        K = jnp.concatenate([K, pad], axis=2)
        V = jnp.concatenate([V, pad], axis=2)
    else:
        K = K[:, :, :L, :]
        V = V[:, :, :L, :]

    qf = jnp.fft.rfft(Q.astype(jnp.float32), axis=2)
    kf = jnp.fft.rfft(K.astype(jnp.float32), axis=2)
    corr = jnp.fft.irfft(qf * jnp.conj(kf), n=L, axis=2)      # [B,H,L,D]

    top_k = max(1, min(int(factor * math.log(L)), L))
    corr_t = jnp.moveaxis(corr, 2, -1)                        # [B,H,D,L]
    w, d = lax.top_k(corr_t, top_k)                           # [B,H,D,k]
    w = jax.nn.softmax(w, axis=-1)

    Vt = jnp.moveaxis(V.astype(jnp.float32), 2, -1)           # [B,H,D,L]
    t = jnp.arange(L)
    idx = (t[None, None, None, None, :] + d[..., None]) % L   # [B,H,D,k,L]
    gathered = jnp.take_along_axis(Vt[:, :, :, None, :], idx, axis=-1)
    out_t = jnp.sum(w[..., None] * gathered, axis=3)          # [B,H,D,L]
    return jnp.moveaxis(out_t, -1, 2)                         # [B,H,L,D]


if __name__ == "__main__":
    key = jax.random.PRNGKey(0)
    kq, kk, kv = jax.random.split(key, 3)

    B, H, L, S, D = 2, 4, 16, 16, 32
    Q = jax.random.normal(kq, (B, H, L, D), jnp.float32)
    K = jax.random.normal(kk, (B, H, S, D), jnp.float32)
    V = jax.random.normal(kv, (B, H, S, D), jnp.float32)

    out = autocorrelation_forward(Q, K, V, factor=1)
    out = jax.block_until_ready(out)

    ref = reference_forward(Q, K, V, factor=1)
    assert out.shape == (B, H, L, D)
    max_diff = float(jnp.max(jnp.abs(out - ref)))
    if max_diff > 2e-3:
        raise SystemExit(f"mismatch vs reference: max_diff={max_diff}")

    print("KERNEL_OK")
</pallas_src>

<mosaic_0001>
module attributes {stable_mosaic.version = 11 : i64} {
  func.func @kernel(%arg0: i32, %arg1: memref<32x16xf32, #tpu.memory_space<vmem>>, %arg2: memref<16x32xf32, #tpu.memory_space<vmem>>, %arg3: memref<16x128xf32, #tpu.memory_space<vmem>>, %arg4: memref<16x128xf32, #tpu.memory_space<vmem>>, %arg5: memref<16x128xf32, #tpu.memory_space<vmem>>, %arg6: memref<16x128xf32, #tpu.memory_space<vmem>>) attributes {dimension_semantics = [#tpu.dimension_semantics<parallel>], iteration_bounds = array<i64: 2>, scalar_prefetch = 0 : i64, scratch_operands = 0 : i64, tpu.core_type = #tpu.core_type<tc>, window_params = [{pipeline_mode = #tpu.pipeline_mode<synchronous>, transform_indices = @transform_0, window_bounds = array<i64: 32, 16>}, {pipeline_mode = #tpu.pipeline_mode<synchronous>, transform_indices = @transform_1, window_bounds = array<i64: 16, 32>}, {transform_indices = @transform_2, window_bounds = array<i64: 16, 128>}, {transform_indices = @transform_3, window_bounds = array<i64: 16, 128>}, {transform_indices = @transform_4, window_bounds = array<i64: 16, 128>}, {transform_indices = @transform_5, window_bounds = array<i64: 16, 128>}]} {
    %c0 = arith.constant 0 : index
    %c0_0 = arith.constant 0 : index
    %0 = vector.load %arg1[%c0, %c0_0] : memref<32x16xf32, #tpu.memory_space<vmem>>, vector<32x16xf32>
    %c0_1 = arith.constant 0 : index
    %c0_2 = arith.constant 0 : index
    %1 = vector.load %arg2[%c0_1, %c0_2] : memref<16x32xf32, #tpu.memory_space<vmem>>, vector<16x32xf32>
    %c0_3 = arith.constant 0 : index
    %c0_4 = arith.constant 0 : index
    %2 = vector.load %arg3[%c0_3, %c0_4] : memref<16x128xf32, #tpu.memory_space<vmem>>, vector<16x128xf32>
    %cst = arith.constant dense<0.000000e+00> : vector<32x128xf32>
    %3 = tpu.matmul %0, %2, %cst {dimension_numbers = #tpu.dot_dimension_numbers<[1], [0], [0], [1], [0, 0, 1, 1], [], []>} : vector<32x16xf32>, vector<16x128xf32>, vector<32x128xf32> -> vector<32x128xf32>
    %c0_5 = arith.constant 0 : index
    %c0_6 = arith.constant 0 : index
    %4 = vector.load %arg4[%c0_5, %c0_6] : memref<16x128xf32, #tpu.memory_space<vmem>>, vector<16x128xf32>
    %cst_7 = arith.constant dense<0.000000e+00> : vector<32x128xf32>
    %5 = tpu.matmul %0, %4, %cst_7 {dimension_numbers = #tpu.dot_dimension_numbers<[1], [0], [0], [1], [0, 0, 1, 1], [], []>} : vector<32x16xf32>, vector<16x128xf32>, vector<32x128xf32> -> vector<32x128xf32>
    %6 = vector.extract_strided_slice %3 {offsets = [0, 0], sizes = [16, 128], strides = [1, 1]} : vector<32x128xf32> to vector<16x128xf32>
    %7 = vector.extract_strided_slice %3 {offsets = [16, 0], sizes = [16, 128], strides = [1, 1]} : vector<32x128xf32> to vector<16x128xf32>
    %8 = vector.extract_strided_slice %5 {offsets = [0, 0], sizes = [16, 128], strides = [1, 1]} : vector<32x128xf32> to vector<16x128xf32>
    %9 = vector.extract_strided_slice %5 {offsets = [16, 0], sizes = [16, 128], strides = [1, 1]} : vector<32x128xf32> to vector<16x128xf32>
    %10 = arith.mulf %6, %8 : vector<16x128xf32>
    %11 = arith.mulf %7, %9 : vector<16x128xf32>
    %12 = arith.addf %10, %11 : vector<16x128xf32>
    %13 = arith.mulf %6, %9 : vector<16x128xf32>
    %14 = arith.mulf %7, %8 : vector<16x128xf32>
    %15 = arith.subf %13, %14 : vector<16x128xf32>
    %16 = tpu.concatenate %12, %15 in 0 : vector<16x128xf32>, vector<16x128xf32> -> vector<32x128xf32>
    %cst_8 = arith.constant dense<0.000000e+00> : vector<16x128xf32>
    %17 = tpu.matmul %1, %16, %cst_8 {dimension_numbers = #tpu.dot_dimension_numbers<[1], [0], [0], [1], [0, 0, 1, 1], [], []>} : vector<16x32xf32>, vector<32x128xf32>, vector<16x128xf32> -> vector<16x128xf32>
    %18 = tpu.iota {dimensions = array<i32: 0>} : vector<16x1xi32>
    %cst_9 = arith.constant 0.000000e+00 : f32
    %19 = vector.broadcast %cst_9 : f32 to vector<16x128xf32>
    %cst_10 = arith.constant dense<0xFF800000> : vector<128xf32>
    %20 = vector.multi_reduction <maximumf>, %17, %cst_10 [0] : vector<16x128xf32> to vector<128xf32>
    %21 = vector.shape_cast %20 : vector<128xf32> to vector<1x128xf32>
    %22 = vector.broadcast %21 : vector<1x128xf32> to vector<16x128xf32>
    %23 = arith.cmpf oeq, %17, %22 : vector<16x128xf32>
    %c16_i32 = arith.constant 16 : i32
    %24 = vector.shape_cast %18 : vector<16x1xi32> to vector<16x1xi32>
    %25 = vector.broadcast %24 : vector<16x1xi32> to vector<16x128xi32>
    %26 = vector.broadcast %c16_i32 : i32 to vector<16x128xi32>
    %27 = arith.select %23, %25, %26 : vector<16x128xi1>, vector<16x128xi32>
    %cst_11 = arith.constant dense<2147483647> : vector<128xi32>
    %28 = vector.multi_reduction <minsi>, %27, %cst_11 [0] : vector<16x128xi32> to vector<128xi32>
    %29 = vector.shape_cast %28 : vector<128xi32> to vector<1x128xi32>
    %30 = vector.broadcast %18 : vector<16x1xi32> to vector<16x128xi32>
    %31 = vector.broadcast %29 : vector<1x128xi32> to vector<16x128xi32>
    %32 = arith.cmpi eq, %30, %31 : vector<16x128xi32>
    %cst_12 = arith.constant 1.000000e+00 : f32
    %33 = vector.broadcast %cst_12 : f32 to vector<1x128xf32>
    %cst_13 = arith.constant 0.000000e+00 : f32
    %34 = vector.shape_cast %33 : vector<1x128xf32> to vector<1x128xf32>
    %35 = vector.broadcast %34 : vector<1x128xf32> to vector<16x128xf32>
    %36 = vector.broadcast %cst_13 : f32 to vector<16x128xf32>
    %37 = arith.select %32, %35, %36 : vector<16x128xi1>, vector<16x128xf32>
    %38 = arith.addf %19, %37 : vector<16x128xf32>
    %cst_14 = arith.constant 0xFF800000 : f32
    %39 = vector.broadcast %cst_14 : f32 to vector<16x128xf32>
    %40 = arith.select %32, %39, %17 : vector<16x128xi1>, vector<16x128xf32>
    %cst_15 = arith.constant dense<0xFF800000> : vector<128xf32>
    %41 = vector.multi_reduction <maximumf>, %40, %cst_15 [0] : vector<16x128xf32> to vector<128xf32>
    %42 = vector.shape_cast %41 : vector<128xf32> to vector<1x128xf32>
    %43 = vector.broadcast %42 : vector<1x128xf32> to vector<16x128xf32>
    %44 = arith.cmpf oeq, %40, %43 : vector<16x128xf32>
    %c16_i32_16 = arith.constant 16 : i32
    %45 = vector.shape_cast %18 : vector<16x1xi32> to vector<16x1xi32>
    %46 = vector.broadcast %45 : vector<16x1xi32> to vector<16x128xi32>
    %47 = vector.broadcast %c16_i32_16 : i32 to vector<16x128xi32>
    %48 = arith.select %44, %46, %47 : vector<16x128xi1>, vector<16x128xi32>
    %cst_17 = arith.constant dense<2147483647> : vector<128xi32>
    %49 = vector.multi_reduction <minsi>, %48, %cst_17 [0] : vector<16x128xi32> to vector<128xi32>
    %50 = vector.shape_cast %49 : vector<128xi32> to vector<1x128xi32>
    %51 = vector.broadcast %18 : vector<16x1xi32> to vector<16x128xi32>
    %52 = vector.broadcast %50 : vector<1x128xi32> to vector<16x128xi32>
    %53 = arith.cmpi eq, %51, %52 : vector<16x128xi32>
    %54 = arith.subf %42, %21 : vector<1x128xf32>
    %55 = math.exp %54 : vector<1x128xf32>
    %56 = arith.addf %33, %55 : vector<1x128xf32>
    %cst_18 = arith.constant 0.000000e+00 : f32
    %57 = vector.shape_cast %55 : vector<1x128xf32> to vector<1x128xf32>
    %58 = vector.broadcast %57 : vector<1x128xf32> to vector<16x128xf32>
    %59 = vector.broadcast %cst_18 : f32 to vector<16x128xf32>
    %60 = arith.select %53, %58, %59 : vector<16x128xi1>, vector<16x128xf32>
    %61 = arith.addf %38, %60 : vector<16x128xf32>
    %cst_19 = arith.constant 1.000000e+00 : f32
    %62 = vector.broadcast %cst_19 : f32 to vector<1x128xf32>
    %63 = arith.divf %62, %56 : vector<1x128xf32>
    %64 = vector.broadcast %63 : vector<1x128xf32> to vector<16x128xf32>
    %65 = arith.mulf %61, %64 : vector<16x128xf32>
    %c0_20 = arith.constant 0 : index
    %c0_21 = arith.constant 0 : index
    %66 = vector.load %arg5[%c0_20, %c0_21] : memref<16x128xf32, #tpu.memory_space<vmem>>, vector<16x128xf32>
    %cst_22 = arith.constant dense<0.000000e+00> : vector<32x128xf32>
    %67 = tpu.matmul %0, %66, %cst_22 {dimension_numbers = #tpu.dot_dimension_numbers<[1], [0], [0], [1], [0, 0, 1, 1], [], []>} : vector<32x16xf32>, vector<16x128xf32>, vector<32x128xf32> -> vector<32x128xf32>
    %cst_23 = arith.constant dense<0.000000e+00> : vector<32x128xf32>
    %68 = tpu.matmul %0, %65, %cst_23 {dimension_numbers = #tpu.dot_dimension_numbers<[1], [0], [0], [1], [0, 0, 1, 1], [], []>} : vector<32x16xf32>, vector<16x128xf32>, vector<32x128xf32> -> vector<32x128xf32>
    %69 = vector.extract_strided_slice %67 {offsets = [0, 0], sizes = [16, 128], strides = [1, 1]} : vector<32x128xf32> to vector<16x128xf32>
    %70 = vector.extract_strided_slice %67 {offsets = [16, 0], sizes = [16, 128], strides = [1, 1]} : vector<32x128xf32> to vector<16x128xf32>
    %71 = vector.extract_strided_slice %68 {offsets = [0, 0], sizes = [16, 128], strides = [1, 1]} : vector<32x128xf32> to vector<16x128xf32>
    %72 = vector.extract_strided_slice %68 {offsets = [16, 0], sizes = [16, 128], strides = [1, 1]} : vector<32x128xf32> to vector<16x128xf32>
    %73 = arith.mulf %69, %71 : vector<16x128xf32>
    %74 = arith.mulf %70, %72 : vector<16x128xf32>
    %75 = arith.addf %73, %74 : vector<16x128xf32>
    %76 = arith.mulf %69, %72 : vector<16x128xf32>
    %77 = arith.mulf %70, %71 : vector<16x128xf32>
    %78 = arith.subf %76, %77 : vector<16x128xf32>
    %79 = tpu.concatenate %75, %78 in 0 : vector<16x128xf32>, vector<16x128xf32> -> vector<32x128xf32>
    %cst_24 = arith.constant dense<0.000000e+00> : vector<16x128xf32>
    %80 = tpu.matmul %1, %79, %cst_24 {dimension_numbers = #tpu.dot_dimension_numbers<[1], [0], [0], [1], [0, 0, 1, 1], [], []>} : vector<16x32xf32>, vector<32x128xf32>, vector<16x128xf32> -> vector<16x128xf32>
    %c0_25 = arith.constant 0 : index
    %c0_26 = arith.constant 0 : index
    %81 = vector.load %arg6[%c0_25, %c0_26] : memref<16x128xf32, #tpu.memory_space<vmem>>, vector<16x128xf32>
    tpu.vector_store %arg6[%c0_25, %c0_26], %80 {strides = array<i32>} : memref<16x128xf32, #tpu.memory_space<vmem>>, vector<16x128xf32>,
    return
  }
  func.func @transform_0(%arg0: i32) -> (i32, i32) {
    %c0_i32 = arith.constant 0 : i32
    %c0_i32_0 = arith.constant 0 : i32
    %c0_i32_1 = arith.constant 0 : i32
    return %c0_i32, %c0_i32_0 : i32, i32
  }
  func.func @transform_1(%arg0: i32) -> (i32, i32) {
    %c0_i32 = arith.constant 0 : i32
    %c0_i32_0 = arith.constant 0 : i32
    %c0_i32_1 = arith.constant 0 : i32
    return %c0_i32, %c0_i32_0 : i32, i32
  }
  func.func @transform_2(%arg0: i32) -> (i32, i32) {
    %c0_i32 = arith.constant 0 : i32
    %c0_i32_0 = arith.constant 0 : i32
    return %c0_i32, %arg0 : i32, i32
  }
  func.func @transform_3(%arg0: i32) -> (i32, i32) {
    %c0_i32 = arith.constant 0 : i32
    %c0_i32_0 = arith.constant 0 : i32
    return %c0_i32, %arg0 : i32, i32
  }
  func.func @transform_4(%arg0: i32) -> (i32, i32) {
    %c0_i32 = arith.constant 0 : i32
    %c0_i32_0 = arith.constant 0 : i32
    return %c0_i32, %arg0 : i32, i32
  }
  func.func @transform_5(%arg0: i32) -> (i32, i32) {
    %c0_i32 = arith.constant 0 : i32
    %c0_i32_0 = arith.constant 0 : i32
    return %c0_i32, %arg0 : i32, i32
  }
}

</mosaic_0001>

<llo_original>
// kernel: autocorrelation_forward.1
$region0: #{autocorrelation_forward.1}
  #allocation0 [shape = 'u32[]', space=smem, size = 0x4, offset = 0x4, fixed_abs, tag = 'smem constant byte address 0x4 - core index']
  #allocation1 [shape = 'u32[72,128]{1,0:T(1,128)}', space=vmem, size = 0x9000, scoped, tag = 'internal scratch']
  %s0 = inlined_call_operand.vmem [shape: f32[32,16], index: 0, kind: input, shape index: {}]
  %s1 = inlined_call_operand.vmem [shape: f32[16,32], index: 1, kind: input, shape index: {}]
  %s2 = inlined_call_operand.vmem [shape: f32[16,256], index: 2, kind: input, shape index: {}]
  %s3 = inlined_call_operand.vmem [shape: f32[16,256], index: 3, kind: input, shape index: {}]
  %s4 = inlined_call_operand.vmem [shape: f32[16,256], index: 4, kind: input, shape index: {}]
  %s5 = inlined_call_operand.vmem [shape: f32[16,256], index: 5, kind: output, shape index: {}]
  %s6 = sld [smem:[#allocation0]]
  $region201: #{autocorrelation_forward.1} parent=0
    _
  %s8 = ssub.s32 1, %s6
  %s9 = scalar_select 0, %s8, %s6
  $region1: #{autocorrelation_forward.1} parent=0
    #allocation2 [shape = 'u8[16384]{0}', space=vmem, size = 0x4000, scoped, tag = 'input window, operand 2']
    #allocation3 [shape = 'u8[16384]{0}', space=vmem, size = 0x4000, scoped, tag = 'input window, operand 3']
    #allocation4 [shape = 'u8[16384]{0}', space=vmem, size = 0x4000, scoped, tag = 'input window, operand 4']
    #allocation5 [shape = 'u8[16384]{0}', space=vmem, size = 0x4000, scoped, tag = 'output window, operand 0']
    loop: start=0, step=1, limit=4
    $region2: #{autocorrelation_forward.1} parent=1 // loop_pre_header
      _
    $region3: #{autocorrelation_forward.1} parent=1 // loop_header
      %s11 = sphi 0, %s15
      %p12 = scmp.ge.s32.totalorder %s11, 4
      %s19 = sphi 0, %s19
      %s21 = sphi 0, %s19
      %s22 = sphi 0, %s21
      %s36 = sphi 0, %s22
      %s40 = sphi 0, %s40
      %s42 = sphi 0, %s40
      %s43 = sphi 0, %s42
      %s57 = sphi 0, %s43
      %s63 = sphi 0, %s65
      %s66 = sphi 0, %s63
      %s67 = sphi 0, %s66
      %s83 = sphi 0, %s67
      %s89 = sphi 0, %s91
      %s92 = sphi 0, %s89
      %s93 = sphi 0, %s92
      %s109 = sphi 0, %s93
      %s115 = sphi 0, %s117
      %s118 = sphi 0, %s115
      %s119 = sphi 0, %s118
      %s135 = sphi 0, %s119
      %s141 = sphi 0, %s143
      %s144 = sphi 0, %s141
      %s145 = sphi 0, %s144
      %s161 = sphi 0, %s145
    $region4: #{autocorrelation_forward.1} parent=1 // loop_header_branch
      %14 = sbr.rel (%p12) target = $region8
    $region5: #{autocorrelation_forward.1} parent=1 // loop_body
      %s16 = ssub.s32 %s11, 1
      %s17 = ssub.s32 %s11, 2
      %s18 = sadd.s32 %s11, 1
      %s20 = sadd.s32 %s19, 1
      %p23 = scmp.eq.s32.totalorder %s11, 1
      %p24 = scmp.ne.s32.totalorder %s19, %s21
      %p25 = scmp.eq.s32.totalorder %s11, 0
      %p26 = por %p24, %p25
      %p27 = scmp.ne.s32.totalorder %s19, %s21
      %p28 = scmp.eq.s32.totalorder %s16, 1
      %p29 = por %p27, %p28
      %p30 = scmp.ne.s32.totalorder %s21, %s22
      %p31 = scmp.eq.s32.totalorder %s16, 0
      %p32 = por %p30, %p31
      %p33 = scmp.ne.s32.totalorder %s21, %s22
      %p34 = scmp.eq.s32.totalorder %s17, 1
      %p35 = por %p33, %p34
      %p37 = scmp.ne.s32.totalorder %s22, %s36
      %p38 = scmp.eq.s32.totalorder %s17, 0
      %p39 = por %p37, %p38
      %s41 = sadd.s32 %s40, 1
      %p44 = scmp.eq.s32.totalorder %s11, 1
      %p45 = scmp.ne.s32.totalorder %s40, %s42
      %p46 = scmp.eq.s32.totalorder %s11, 0
      %p47 = por %p45, %p46
      %p48 = scmp.ne.s32.totalorder %s40, %s42
      %p49 = scmp.eq.s32.totalorder %s16, 1
      %p50 = por %p48, %p49
      %p51 = scmp.ne.s32.totalorder %s42, %s43
      %p52 = scmp.eq.s32.totalorder %s16, 0
      %p53 = por %p51, %p52
      %p54 = scmp.ne.s32.totalorder %s42, %s43
      %p55 = scmp.eq.s32.totalorder %s17, 1
      %p56 = por %p54, %p55
      %p58 = scmp.ne.s32.totalorder %s43, %s57
      %p59 = scmp.eq.s32.totalorder %s17, 0
      %p60 = por %p58, %p59
      %s61 = ssub.s32 %s11, %s18
      %p62 = scmp.eq.s32.totalorder %s61, 0
      %s64 = sadd.s32 %s63, 1
      %s65 = scalar_select %p62, %s63, %s64
      %p68 = pneg %p62
      %p69 = scmp.eq.s32.totalorder %s11, 1
      %p70 = por %p68, %p69
      %p71 = scmp.ne.s32.totalorder %s63, %s66
      %p72 = scmp.eq.s32.totalorder %s11, 0
      %p73 = por %p71, %p72
      %p74 = scmp.ne.s32.totalorder %s63, %s66
      %p75 = scmp.eq.s32.totalorder %s16, 1
      %p76 = por %p74, %p75
      %p77 = scmp.ne.s32.totalorder %s66, %s67
      %p78 = scmp.eq.s32.totalorder %s16, 0
      %p79 = por %p77, %p78
      %p80 = scmp.ne.s32.totalorder %s66, %s67
      %p81 = scmp.eq.s32.totalorder %s17, 1
      %p82 = por %p80, %p81
      %p84 = scmp.ne.s32.totalorder %s67, %s83
      %p85 = scmp.eq.s32.totalorder %s17, 0
      %p86 = por %p84, %p85
      %s87 = ssub.s32 %s11, %s18
      %p88 = scmp.eq.s32.totalorder %s87, 0
      %s90 = sadd.s32 %s89, 1
      %s91 = scalar_select %p88, %s89, %s90
      %p94 = pneg %p88
      %p95 = scmp.eq.s32.totalorder %s11, 1
      %p96 = por %p94, %p95
      %p97 = scmp.ne.s32.totalorder %s89, %s92
      %p98 = scmp.eq.s32.totalorder %s11, 0
      %p99 = por %p97, %p98
      %p100 = scmp.ne.s32.totalorder %s89, %s92
      %p101 = scmp.eq.s32.totalorder %s16, 1
      %p102 = por %p100, %p101
      %p103 = scmp.ne.s32.totalorder %s92, %s93
      %p104 = scmp.eq.s32.totalorder %s16, 0
      %p105 = por %p103, %p104
      %p106 = scmp.ne.s32.totalorder %s92, %s93
      %p107 = scmp.eq.s32.totalorder %s17, 1
      %p108 = por %p106, %p107
      %p110 = scmp.ne.s32.totalorder %s93, %s109
      %p111 = scmp.eq.s32.totalorder %s17, 0
      %p112 = por %p110, %p111
      %s113 = ssub.s32 %s11, %s18
      %p114 = scmp.eq.s32.totalorder %s113, 0
      %s116 = sadd.s32 %s115, 1
      %s117 = scalar_select %p114, %s115, %s116
      %p120 = pneg %p114
      %p121 = scmp.eq.s32.totalorder %s11, 1
      %p122 = por %p120, %p121
      %p123 = scmp.ne.s32.totalorder %s115, %s118
      %p124 = scmp.eq.s32.totalorder %s11, 0
      %p125 = por %p123, %p124
      %p126 = scmp.ne.s32.totalorder %s115, %s118
      %p127 = scmp.eq.s32.totalorder %s16, 1
      %p128 = por %p126, %p127
      %p129 = scmp.ne.s32.totalorder %s118, %s119
      %p130 = scmp.eq.s32.totalorder %s16, 0
      %p131 = por %p129, %p130
      %p132 = scmp.ne.s32.totalorder %s118, %s119
      %p133 = scmp.eq.s32.totalorder %s17, 1
      %p134 = por %p132, %p133
      %p136 = scmp.ne.s32.totalorder %s119, %s135
      %p137 = scmp.eq.s32.totalorder %s17, 0
      %p138 = por %p136, %p137
      %s139 = ssub.s32 %s11, %s18
      %p140 = scmp.eq.s32.totalorder %s139, 0
      %s142 = sadd.s32 %s141, 1
      %s143 = scalar_select %p140, %s141, %s142
      %p146 = pneg %p140
      %p147 = scmp.eq.s32.totalorder %s11, 1
      %p148 = por %p146, %p147
      %p149 = scmp.ne.s32.totalorder %s141, %s144
      %p150 = scmp.eq.s32.totalorder %s11, 0
      %p151 = por %p149, %p150
      %p152 = scmp.ne.s32.totalorder %s141, %s144
      %p153 = scmp.eq.s32.totalorder %s16, 1
      %p154 = por %p152, %p153
      %p155 = scmp.ne.s32.totalorder %s144, %s145
      %p156 = scmp.eq.s32.totalorder %s16, 0
      %p157 = por %p155, %p156
      %p158 = scmp.ne.s32.totalorder %s144, %s145
      %p159 = scmp.eq.s32.totalorder %s17, 1
      %p160 = por %p158, %p159
      %p162 = scmp.ne.s32.totalorder %s145, %s161
      %p163 = scmp.eq.s32.totalorder %s17, 0
      %p164 = por %p162, %p163
      %p165 = scmp.le.s32.totalorder 1, %s11
      %p166 = scmp.lt.s32.totalorder %s11, 3
      %p167 = pnand %p165, %p166
      %p168 = pneg %p167
      // Predicated region
      $region9: #{autocorrelation_forward.1} parent=5 // pred_check
        _
      $region10: #{autocorrelation_forward.1} parent=5 // pred_check_branch
        %170 = sbr.rel (%p167) target = $region12
      $region11: #{autocorrelation_forward.1} parent=5 // pred_region
        %s171 = ssub.s32 %s11, 1
        // Predicated region
        $region13: #{autocorrelation_forward.1} parent=11 // pred_check
          %p172 = pneg %p32
        $region14: #{autocorrelation_forward.1} parent=11 // pred_check_branch
          %174 = sbr.rel (%p172) target = $region16
        $region15: #{autocorrelation_forward.1} parent=11 // pred_region
          _
        $region16: #{autocorrelation_forward.1} parent=11 // pred_fallthru
          _
        // Predicated region
        $region17: #{autocorrelation_forward.1} parent=11 // pred_check
          %p175 = pneg %p53
        $region18: #{autocorrelation_forward.1} parent=11 // pred_check_branch
          %177 = sbr.rel (%p175) target = $region20
        $region19: #{autocorrelation_forward.1} parent=11 // pred_region
          _
        $region20: #{autocorrelation_forward.1} parent=11 // pred_fallthru
          _
      $region12: #{autocorrelation_forward.1} parent=5 // pred_fallthru
        _
      %p178 = scmp.lt.s32.totalorder %s11, 2
      // Predicated region
      $region21: #{autocorrelation_forward.1} parent=5 // pred_check
        %p179 = pneg %p178
      $region22: #{autocorrelation_forward.1} parent=5 // pred_check_branch
        %181 = sbr.rel (%p179) target = $region24
      $region23: #{autocorrelation_forward.1} parent=5 // pred_region
        // Predicated region
        $region25: #{autocorrelation_forward.1} parent=23 // pred_check
          %p182 = pneg %p73
        $region26: #{autocorrelation_forward.1} parent=23 // pred_check_branch
          %184 = sbr.rel (%p182) target = $region28
        $region27: #{autocorrelation_forward.1} parent=23 // pred_region
          %s185 = sand.u32 %s63, 1
          %s186 = sand.u32 %s63, 1
          %s187 = smul.addr %s186, 16
          %s188 = scalar_lea.vmem [#allocation2], %s187
          %s189 = smul.addr %s11, 8
          %s190 = scalar_lea.vmem %s2, %s189
          // Predicated region
          $region29: #{autocorrelation_forward.1} parent=27 // pred_check
            _
          $region30: #{autocorrelation_forward.1} parent=27 // pred_check_branch
            %192 = sbr.rel (0) target = $region32
          $region31: #{autocorrelation_forward.1} parent=27 // pred_region
            // Predicated region
            $region33: #{autocorrelation_forward.1} parent=31 // pred_check
              _
            $region34: #{autocorrelation_forward.1} parent=31 // pred_check_branch
              %194 = sbr.rel (0) target = $region36
            $region35: #{autocorrelation_forward.1} parent=31 // pred_region
              // Predicated region
              $region48: #{autocorrelation_forward.1} parent=35 // pred_check
                _
              $region49: #{autocorrelation_forward.1} parent=35 // pred_check_branch
                %212 = sbr.rel (0) target = $region51
              $region50: #{autocorrelation_forward.1} parent=35 // pred_region
                loop: start=0, step=1, limit=1
                $region52: #{autocorrelation_forward.1} parent=50 // loop_pre_header
                  _
                $region53: #{autocorrelation_forward.1} parent=50 // loop_header
                  %s214 = sphi 0, %s218
                  %p215 = scmp.ge.s32.totalorder %s214, 1
                  %s219 = sphi %s190, %s190
                  %s220 = sphi %s188, %s188
                $region54: #{autocorrelation_forward.1} parent=50 // loop_header_branch
                  %217 = sbr.rel (%p215) target = $region58
                $region55: #{autocorrelation_forward.1} parent=50 // loop_body
                  %v221 = vld [vmem:[%s219] sm:$0xff]
                  %222 = vst [vmem:[%s220] sm:$0xff] %v221
                  %v223 = vld [vmem:[%s219 + $0x10] sm:$0xff]
                  %224 = vst [vmem:[%s220 + $0x8] sm:$0xff] %v223
                $region56: #{autocorrelation_forward.1} parent=50 // loop_footer
                  %s218 = sadd.s32 1, %s214
                $region57: #{autocorrelation_forward.1} parent=50 // loop_footer_branch
                  %213 = sbr.rel target = $region53
                $region58: #{autocorrelation_forward.1} parent=50 // loop_exit
                  _
              $region51: #{autocorrelation_forward.1} parent=35 // pred_fallthru
                _
              // Predicated region
              $region59: #{autocorrelation_forward.1} parent=35 // pred_check
                _
              $region60: #{autocorrelation_forward.1} parent=35 // pred_check_branch
                %226 = sbr.rel target = $region62
              $region61: #{autocorrelation_forward.1} parent=35 // pred_region
                _
              $region62: #{autocorrelation_forward.1} parent=35 // pred_fallthru
                _
            $region36: #{autocorrelation_forward.1} parent=31 // pred_fallthru
              _
            // Predicated region
            $region37: #{autocorrelation_forward.1} parent=31 // pred_check
              _
            $region38: #{autocorrelation_forward.1} parent=31 // pred_check_branch
              %196 = sbr.rel target = $region40
            $region39: #{autocorrelation_forward.1} parent=31 // pred_region
              %s198 = ssub.s32 256, 1
              loop: start=0, step=1, limit=1
              $region41: #{autocorrelation_forward.1} parent=39 // loop_pre_header
                _
              $region42: #{autocorrelation_forward.1} parent=39 // loop_header
                %s200 = sphi 0, %s204
                %p201 = scmp.ge.s32.totalorder %s200, 1
                %s205 = sphi %s190, %s190
                %s206 = sphi %s188, %s188
              $region43: #{autocorrelation_forward.1} parent=39 // loop_header_branch
                %203 = sbr.rel (%p201) target = $region47
              $region44: #{autocorrelation_forward.1} parent=39 // loop_body
                %v207 = vld [vmem:[%s205] sm:%s198]
                %208 = vst [vmem:[%s206] sm:%s198] %v207
                %v209 = vld [vmem:[%s205 + $0x10] sm:%s198]
                %210 = vst [vmem:[%s206 + $0x8] sm:%s198] %v209
              $region45: #{autocorrelation_forward.1} parent=39 // loop_footer
                %s204 = sadd.s32 1, %s200
              $region46: #{autocorrelation_forward.1} parent=39 // loop_footer_branch
                %199 = sbr.rel target = $region42
              $region47: #{autocorrelation_forward.1} parent=39 // loop_exit
                _
            $region40: #{autocorrelation_forward.1} parent=31 // pred_fallthru
              _
          $region32: #{autocorrelation_forward.1} parent=27 // pred_fallthru
            _
          %227 = vnop
        $region28: #{autocorrelation_forward.1} parent=23 // pred_fallthru
          _
        // Predicated region
        $region63: #{autocorrelation_forward.1} parent=23 // pred_check
          %p228 = pneg %p99
        $region64: #{autocorrelation_forward.1} parent=23 // pred_check_branch
          %230 = sbr.rel (%p228) target = $region66
        $region65: #{autocorrelation_forward.1} parent=23 // pred_region
          %s231 = sand.u32 %s89, 1
          %s232 = sand.u32 %s89, 1
          %s233 = smul.addr %s232, 16
          %s234 = scalar_lea.vmem [#allocation3], %s233
          %s235 = smul.addr %s11, 8
          %s236 = scalar_lea.vmem %s3, %s235
          // Predicated region
          $region67: #{autocorrelation_forward.1} parent=65 // pred_check
            _
          $region68: #{autocorrelation_forward.1} parent=65 // pred_check_branch
            %238 = sbr.rel (0) target = $region70
          $region69: #{autocorrelation_forward.1} parent=65 // pred_region
            // Predicated region
            $region71: #{autocorrelation_forward.1} parent=69 // pred_check
              _
            $region72: #{autocorrelation_forward.1} parent=69 // pred_check_branch
              %240 = sbr.rel (0) target = $region74
            $region73: #{autocorrelation_forward.1} parent=69 // pred_region
              // Predicated region
              $region86: #{autocorrelation_forward.1} parent=73 // pred_check
                _
              $region87: #{autocorrelation_forward.1} parent=73 // pred_check_branch
                %258 = sbr.rel (0) target = $region89
              $region88: #{autocorrelation_forward.1} parent=73 // pred_region
                loop: start=0, step=1, limit=1
                $region90: #{autocorrelation_forward.1} parent=88 // loop_pre_header
                  _
                $region91: #{autocorrelation_forward.1} parent=88 // loop_header
                  %s260 = sphi 0, %s264
                  %p261 = scmp.ge.s32.totalorder %s260, 1
                  %s265 = sphi %s236, %s236
                  %s266 = sphi %s234, %s234
                $region92: #{autocorrelation_forward.1} parent=88 // loop_header_branch
                  %263 = sbr.rel (%p261) target = $region96
                $region93: #{autocorrelation_forward.1} parent=88 // loop_body
                  %v267 = vld [vmem:[%s265] sm:$0xff]
                  %268 = vst [vmem:[%s266] sm:$0xff] %v267
                  %v269 = vld [vmem:[%s265 + $0x10] sm:$0xff]
                  %270 = vst [vmem:[%s266 + $0x8] sm:$0xff] %v269
                $region94: #{autocorrelation_forward.1} parent=88 // loop_footer
                  %s264 = sadd.s32 1, %s260
                $region95: #{autocorrelation_forward.1} parent=88 // loop_footer_branch
                  %259 = sbr.rel target = $region91
                $region96: #{autocorrelation_forward.1} parent=88 // loop_exit
                  _
              $region89: #{autocorrelation_forward.1} parent=73 // pred_fallthru
                _
              // Predicated region
              $region97: #{autocorrelation_forward.1} parent=73 // pred_check
                _
              $region98: #{autocorrelation_forward.1} parent=73 // pred_check_branch
                %272 = sbr.rel target = $region100
              $region99: #{autocorrelation_forward.1} parent=73 // pred_region
                _
              $region100: #{autocorrelation_forward.1} parent=73 // pred_fallthru
                _
            $region74: #{autocorrelation_forward.1} parent=69 // pred_fallthru
              _
            // Predicated region
            $region75: #{autocorrelation_forward.1} parent=69 // pred_check
              _
            $region76: #{autocorrelation_forward.1} parent=69 // pred_check_branch
              %242 = sbr.rel target = $region78
            $region77: #{autocorrelation_forward.1} parent=69 // pred_region
              %s244 = ssub.s32 256, 1
              loop: start=0, step=1, limit=1
              $region79: #{autocorrelation_forward.1} parent=77 // loop_pre_header
                _
              $region80: #{autocorrelation_forward.1} parent=77 // loop_header
                %s246 = sphi 0, %s250
                %p247 = scmp.ge.s32.totalorder %s246, 1
                %s251 = sphi %s236, %s236
                %s252 = sphi %s234, %s234
              $region81: #{autocorrelation_forward.1} parent=77 // loop_header_branch
                %249 = sbr.rel (%p247) target = $region85
              $region82: #{autocorrelation_forward.1} parent=77 // loop_body
                %v253 = vld [vmem:[%s251] sm:%s244]
                %254 = vst [vmem:[%s252] sm:%s244] %v253
                %v255 = vld [vmem:[%s251 + $0x10] sm:%s244]
                %256 = vst [vmem:[%s252 + $0x8] sm:%s244] %v255
              $region83: #{autocorrelation_forward.1} parent=77 // loop_footer
                %s250 = sadd.s32 1, %s246
              $region84: #{autocorrelation_forward.1} parent=77 // loop_footer_branch
                %245 = sbr.rel target = $region80
              $region85: #{autocorrelation_forward.1} parent=77 // loop_exit
                _
            $region78: #{autocorrelation_forward.1} parent=69 // pred_fallthru
              _
          $region70: #{autocorrelation_forward.1} parent=65 // pred_fallthru
            _
          %273 = vnop
        $region66: #{autocorrelation_forward.1} parent=23 // pred_fallthru
          _
        // Predicated region
        $region101: #{autocorrelation_forward.1} parent=23 // pred_check
          %p274 = pneg %p125
        $region102: #{autocorrelation_forward.1} parent=23 // pred_check_branch
          %276 = sbr.rel (%p274) target = $region104
        $region103: #{autocorrelation_forward.1} parent=23 // pred_region
          %s277 = sand.u32 %s115, 1
          %s278 = sand.u32 %s115, 1
          %s279 = smul.addr %s278, 16
          %s280 = scalar_lea.vmem [#allocation4], %s279
          %s281 = smul.addr %s11, 8
          %s282 = scalar_lea.vmem %s4, %s281
          // Predicated region
          $region105: #{autocorrelation_forward.1} parent=103 // pred_check
            _
          $region106: #{autocorrelation_forward.1} parent=103 // pred_check_branch
            %284 = sbr.rel (0) target = $region108
          $region107: #{autocorrelation_forward.1} parent=103 // pred_region
            // Predicated region
            $region109: #{autocorrelation_forward.1} parent=107 // pred_check
              _
            $region110: #{autocorrelation_forward.1} parent=107 // pred_check_branch
              %286 = sbr.rel (0) target = $region112
            $region111: #{autocorrelation_forward.1} parent=107 // pred_region
              // Predicated region
              $region124: #{autocorrelation_forward.1} parent=111 // pred_check
                _
              $region125: #{autocorrelation_forward.1} parent=111 // pred_check_branch
                %304 = sbr.rel (0) target = $region127
              $region126: #{autocorrelation_forward.1} parent=111 // pred_region
                loop: start=0, step=1, limit=1
                $region128: #{autocorrelation_forward.1} parent=126 // loop_pre_header
                  _
                $region129: #{autocorrelation_forward.1} parent=126 // loop_header
                  %s306 = sphi 0, %s310
                  %p307 = scmp.ge.s32.totalorder %s306, 1
                  %s311 = sphi %s282, %s282
                  %s312 = sphi %s280, %s280
                $region130: #{autocorrelation_forward.1} parent=126 // loop_header_branch
                  %309 = sbr.rel (%p307) target = $region134
                $region131: #{autocorrelation_forward.1} parent=126 // loop_body
                  %v313 = vld [vmem:[%s311] sm:$0xff]
                  %314 = vst [vmem:[%s312] sm:$0xff] %v313
                  %v315 = vld [vmem:[%s311 + $0x10] sm:$0xff]
                  %316 = vst [vmem:[%s312 + $0x8] sm:$0xff] %v315
                $region132: #{autocorrelation_forward.1} parent=126 // loop_footer
                  %s310 = sadd.s32 1, %s306
                $region133: #{autocorrelation_forward.1} parent=126 // loop_footer_branch
                  %305 = sbr.rel target = $region129
                $region134: #{autocorrelation_forward.1} parent=126 // loop_exit
                  _
              $region127: #{autocorrelation_forward.1} parent=111 // pred_fallthru
                _
              // Predicated region
              $region135: #{autocorrelation_forward.1} parent=111 // pred_check
                _
              $region136: #{autocorrelation_forward.1} parent=111 // pred_check_branch
                %318 = sbr.rel target = $region138
              $region137: #{autocorrelation_forward.1} parent=111 // pred_region
                _
              $region138: #{autocorrelation_forward.1} parent=111 // pred_fallthru
                _
            $region112: #{autocorrelation_forward.1} parent=107 // pred_fallthru
              _
            // Predicated region
            $region113: #{autocorrelation_forward.1} parent=107 // pred_check
              _
            $region114: #{autocorrelation_forward.1} parent=107 // pred_check_branch
              %288 = sbr.rel target = $region116
            $region115: #{autocorrelation_forward.1} parent=107 // pred_region
              %s290 = ssub.s32 256, 1
              loop: start=0, step=1, limit=1
              $region117: #{autocorrelation_forward.1} parent=115 // loop_pre_header
                _
              $region118: #{autocorrelation_forward.1} parent=115 // loop_header
                %s292 = sphi 0, %s296
                %p293 = scmp.ge.s32.totalorder %s292, 1
                %s297 = sphi %s282, %s282
                %s298 = sphi %s280, %s280
              $region119: #{autocorrelation_forward.1} parent=115 // loop_header_branch
                %295 = sbr.rel (%p293) target = $region123
              $region120: #{autocorrelation_forward.1} parent=115 // loop_body
                %v299 = vld [vmem:[%s297] sm:%s290]
                %300 = vst [vmem:[%s298] sm:%s290] %v299
                %v301 = vld [vmem:[%s297 + $0x10] sm:%s290]
                %302 = vst [vmem:[%s298 + $0x8] sm:%s290] %v301
              $region121: #{autocorrelation_forward.1} parent=115 // loop_footer
                %s296 = sadd.s32 1, %s292
              $region122: #{autocorrelation_forward.1} parent=115 // loop_footer_branch
                %291 = sbr.rel target = $region118
              $region123: #{autocorrelation_forward.1} parent=115 // loop_exit
                _
            $region116: #{autocorrelation_forward.1} parent=107 // pred_fallthru
              _
          $region108: #{autocorrelation_forward.1} parent=103 // pred_fallthru
            _
          %319 = vnop
        $region104: #{autocorrelation_forward.1} parent=23 // pred_fallthru
          _
      $region24: #{autocorrelation_forward.1} parent=5 // pred_fallthru
        _
      %p320 = scmp.le.s32.totalorder 1, %s11
      %p321 = scmp.lt.s32.totalorder %s11, 3
      %p322 = pnand %p320, %p321
      %p323 = pneg %p322
      // Predicated region
      $region139: #{autocorrelation_forward.1} parent=5 // pred_check
        _
      $region140: #{autocorrelation_forward.1} parent=5 // pred_check_branch
        %325 = sbr.rel (%p322) target = $region142
      $region141: #{autocorrelation_forward.1} parent=5 // pred_region
        %s326 = ssub.s32 %s11, 1
        %s327 = sand.u32 %s66, 1
        %s328 = sand.u32 %s66, 1
        %s329 = smul.addr %s328, 16
        %s330 = scalar_lea.vmem [#allocation2], %s329
        // Predicated region
        $region143: #{autocorrelation_forward.1} parent=141 // pred_check
          %p331 = pneg %p79
        $region144: #{autocorrelation_forward.1} parent=141 // pred_check_branch
          %333 = sbr.rel (%p331) target = $region146
        $region145: #{autocorrelation_forward.1} parent=141 // pred_region
          _
        $region146: #{autocorrelation_forward.1} parent=141 // pred_fallthru
          _
        %s334 = sand.u32 %s92, 1
        %s335 = sand.u32 %s92, 1
        %s336 = smul.addr %s335, 16
        %s337 = scalar_lea.vmem [#allocation3], %s336
        // Predicated region
        $region147: #{autocorrelation_forward.1} parent=141 // pred_check
          %p338 = pneg %p105
        $region148: #{autocorrelation_forward.1} parent=141 // pred_check_branch
          %340 = sbr.rel (%p338) target = $region150
        $region149: #{autocorrelation_forward.1} parent=141 // pred_region
          _
        $region150: #{autocorrelation_forward.1} parent=141 // pred_fallthru
          _
        %s341 = sand.u32 %s118, 1
        %s342 = sand.u32 %s118, 1
        %s343 = smul.addr %s342, 16
        %s344 = scalar_lea.vmem [#allocation4], %s343
        // Predicated region
        $region151: #{autocorrelation_forward.1} parent=141 // pred_check
          %p345 = pneg %p131
        $region152: #{autocorrelation_forward.1} parent=141 // pred_check_branch
          %347 = sbr.rel (%p345) target = $region154
        $region153: #{autocorrelation_forward.1} parent=141 // pred_region
          _
        $region154: #{autocorrelation_forward.1} parent=141 // pred_fallthru
          _
        %p348 = pneg %p32
        %p349 = pneg %p29
        %p350 = pneg %p53
        %p351 = pneg %p50
        %s352 = sand.u32 %s66, 1
        %s353 = sand.u32 %s66, 1
        %s354 = smul.addr %s353, 16
        %s355 = scalar_lea.vmem [#allocation2], %s354
        %p356 = pneg %p79
        %p357 = pneg %p76
        %s358 = sand.u32 %s92, 1
        %s359 = sand.u32 %s92, 1
        %s360 = smul.addr %s359, 16
        %s361 = scalar_lea.vmem [#allocation3], %s360
        %p362 = pneg %p105
        %p363 = pneg %p102
        %s364 = sand.u32 %s118, 1
        %s365 = sand.u32 %s118, 1
        %s366 = smul.addr %s365, 16
        %s367 = scalar_lea.vmem [#allocation4], %s366
        %p368 = pneg %p131
        %p369 = pneg %p128
        %p370 = pneg %p157
        %p371 = pneg %p154
        %s372 = sand.u32 %s144, 1
        %s373 = sand.u32 %s144, 1
        %s374 = smul.addr %s373, 16
        %s375 = scalar_lea.vmem [#allocation5], %s374
        %v376 = vld [vmem:[%s0] sm:$0xff]
        %v377 = vld [vmem:[%s0 + $0x8] sm:$0xff]
        %v378 = vld [vmem:[%s0 + $0x10] sm:$0xff]
        %v379 = vld [vmem:[%s0 + $0x18] sm:$0xff]
        %v380 = vld [vmem:[%s1] sm:$0xff]
        %v381 = vld [vmem:[%s1 + $0x8] sm:$0xff]
        %v382 = vld [vmem:[%s330] sm:$0xff]
        %v383 = vld [vmem:[%s330 + $0x8] sm:$0xff]
        %vm384 = vcmask 130048
        %v386 = vsel %vm384, %v376, 0
        %v389 = vsel %vm384, %v377, 0
        %v392 = vsel %vm384, %v378, 0
        %v395 = vsel %vm384, %v379, 0
        %397 = vmatpush.msra.mxu0 0.0
        %398 = vmatpush.msra.mxu0 0.0
        %399 = vmatpush.msra.mxu0 0.0
        %400 = vmatpush.msra.mxu0 0.0
        %401 = vmatpush.msra.mxu0 0.0
        %402 = vmatpush.msra.mxu0 0.0
        %403 = vmatpush.msra.mxu0 0.0
        %404 = vmatpush.msra.mxu0 0.0
        %405 = vmatpush.msra.mxu0 0.0
        %406 = vmatpush.msra.mxu0 0.0
        %407 = vmatpush.msra.mxu0 0.0
        %408 = vmatpush.msra.mxu0 0.0
        %409 = vmatpush.msra.mxu0 0.0
        %410 = vmatpush.msra.mxu0 0.0
        %411 = vmatpush.msra.mxu0 %v383
        %412 = vmatpush.msra.mxu0 %v382
        %413 = vmatmul.f32.gmra.mxu0 %v386
        %v414 = vpop.f32.mrf.mxu0
        %v415 = vadd.f32 0.0, %v414
        %416 = vmatmul.f32.gmra.mxu0 %v389
        %v417 = vpop.f32.mrf.mxu0
        %v418 = vadd.f32 0.0, %v417
        %419 = vmatmul.f32.gmra.mxu0 %v392
        %v420 = vpop.f32.mrf.mxu0
        %v421 = vadd.f32 0.0, %v420
        %422 = vmatmul.f32.gmra.mxu0 %v395
        %v423 = vpop.f32.mrf.mxu0
        %v424 = vadd.f32 0.0, %v423
        %425 = vdwg.mxu0
        %v426 = vld [vmem:[%s337] sm:$0xff]
        %v427 = vld [vmem:[%s337 + $0x8] sm:$0xff]
        %428 = vmatpush.msra.mxu0 0.0
        %429 = vmatpush.msra.mxu0 0.0
        %430 = vmatpush.msra.mxu0 0.0
        %431 = vmatpush.msra.mxu0 0.0
        %432 = vmatpush.msra.mxu0 0.0
        %433 = vmatpush.msra.mxu0 0.0
        %434 = vmatpush.msra.mxu0 0.0
        %435 = vmatpush.msra.mxu0 0.0
        %436 = vmatpush.msra.mxu0 0.0
        %437 = vmatpush.msra.mxu0 0.0
        %438 = vmatpush.msra.mxu0 0.0
        %439 = vmatpush.msra.mxu0 0.0
        %440 = vmatpush.msra.mxu0 0.0
        %441 = vmatpush.msra.mxu0 0.0
        %442 = vmatpush.msra.mxu0 %v427
        %443 = vmatpush.msra.mxu0 %v426
        %444 = vmatmul.f32.gmra.mxu0 %v386
        %v445 = vpop.f32.mrf.mxu0
        %v446 = vadd.f32 0.0, %v445
        %447 = vmatmul.f32.gmra.mxu0 %v389
        %v448 = vpop.f32.mrf.mxu0
        %v449 = vadd.f32 0.0, %v448
        %450 = vmatmul.f32.gmra.mxu0 %v392
        %v451 = vpop.f32.mrf.mxu0
        %v452 = vadd.f32 0.0, %v451
        %453 = vmatmul.f32.gmra.mxu0 %v395
        %v454 = vpop.f32.mrf.mxu0
        %v455 = vadd.f32 0.0, %v454
        %456 = vdwg.mxu0
        %v457 = vmul.f32 %v415, %v446
        %v458 = vmul.f32 %v418, %v449
        %v459 = vmul.f32 %v421, %v452
        %v460 = vmul.f32 %v424, %v455
        %v461 = vadd.f32 %v457, %v459
        %v462 = vadd.f32 %v458, %v460
        %v463 = vmul.f32 %v415, %v452
        %v464 = vmul.f32 %v418, %v455
        %v465 = vmul.f32 %v421, %v446
        %v466 = vmul.f32 %v424, %v449
        %v467 = vsub.f32 %v463, %v465
        %v468 = vsub.f32 %v464, %v466
        %vm469 = vcmask 261120
        %v471 = vsel %vm469, %v380, 0
        %v474 = vsel %vm469, %v381, 0
        %476 = vmatpush.msra.mxu0 0.0
        %477 = vmatpush.msra.mxu0 0.0
        %478 = vmatpush.msra.mxu0 0.0
        %479 = vmatpush.msra.mxu0 0.0
        %480 = vmatpush.msra.mxu0 0.0
        %481 = vmatpush.msra.mxu0 0.0
        %482 = vmatpush.msra.mxu0 0.0
        %483 = vmatpush.msra.mxu0 0.0
        %484 = vmatpush.msra.mxu0 0.0
        %485 = vmatpush.msra.mxu0 0.0
        %486 = vmatpush.msra.mxu0 0.0
        %487 = vmatpush.msra.mxu0 0.0
        %488 = vmatpush.msra.mxu0 %v468
        %489 = vmatpush.msra.mxu0 %v467
        %490 = vmatpush.msra.mxu0 %v462
        %491 = vmatpush.msra.mxu0 %v461
        %492 = vmatmul.f32.gmra.mxu0 %v471
        %v493 = vpop.f32.mrf.mxu0
        %v494 = vadd.f32 0.0, %v493
        %495 = vmatmul.f32.gmra.mxu0 %v474
        %v496 = vpop.f32.mrf.mxu0
        %v497 = vadd.f32 0.0, %v496
        %498 = vdwg.mxu0
        %v499 = vlaneseq
        %v500 = vshrl.u32 %v499, 7
        %v501 = vadd.s32 %v500, 8
        %v502 = vmax.f32 %v494, %v497
        %v503 = vrot.slane %v502, 4
        %v504 = vmax.f32 %v502, %v503
        %v505 = vrot.slane %v504, 2
        %v506 = vmax.f32 %v504, %v505
        %v507 = vrot.slane %v506, 1
        %v508 = vmax.f32 %v506, %v507
        %vm509 = vcmp.eq.f32.partialorder %v494, %v508
        %vm510 = vcmp.eq.f32.partialorder %v497, %v508
        %v511 = vsel %vm509, %v500, 16
        %v512 = vsel %vm510, %v501, 16
        %vm513 = vcmp.lt.s32.totalorder %v511, %v512
        %v514 = vsel %vm513, %v511, %v512
        %v515 = vrot.slane %v514, 4
        %vm516 = vcmp.lt.s32.totalorder %v514, %v515
        %v517 = vsel %vm516, %v514, %v515
        %v518 = vrot.slane %v517, 2
        %vm519 = vcmp.lt.s32.totalorder %v517, %v518
        %v520 = vsel %vm519, %v517, %v518
        %v521 = vrot.slane %v520, 1
        %vm522 = vcmp.lt.s32.totalorder %v520, %v521
        %v523 = vsel %vm522, %v520, %v521
        %vm524 = vcmp.eq.s32.totalorder %v500, %v523
        %vm525 = vcmp.eq.s32.totalorder %v501, %v523
        %v526 = vsel %vm524, 1.0, 0.0
        %v527 = vsel %vm525, 1.0, 0.0
        %v528 = vadd.f32 %v526, 0.0
        %v529 = vadd.f32 %v527, 0.0
        %v530 = vsel %vm524, -inf, %v494
        %v531 = vsel %vm525, -inf, %v497
        %v532 = vmax.f32 %v530, %v531
        %v533 = vrot.slane %v532, 4
        %v534 = vmax.f32 %v532, %v533
        %v535 = vrot.slane %v534, 2
        %v536 = vmax.f32 %v534, %v535
        %v537 = vrot.slane %v536, 1
        %v538 = vmax.f32 %v536, %v537
        %vm539 = vcmp.eq.f32.partialorder %v530, %v538
        %vm540 = vcmp.eq.f32.partialorder %v531, %v538
        %v541 = vsel %vm539, %v500, 16
        %v542 = vsel %vm540, %v501, 16
        %vm543 = vcmp.lt.s32.totalorder %v541, %v542
        %v544 = vsel %vm543, %v541, %v542
        %v545 = vrot.slane %v544, 4
        %vm546 = vcmp.lt.s32.totalorder %v544, %v545
        %v547 = vsel %vm546, %v544, %v545
        %v548 = vrot.slane %v547, 2
        %vm549 = vcmp.lt.s32.totalorder %v547, %v548
        %v550 = vsel %vm549, %v547, %v548
        %v551 = vrot.slane %v550, 1
        %vm552 = vcmp.lt.s32.totalorder %v550, %v551
        %v553 = vsel %vm552, %v550, %v551
        %vm554 = vcmp.eq.s32.totalorder %v500, %v553
        %vm555 = vcmp.eq.s32.totalorder %v501, %v553
        %v556 = vsub.f32 %v538, %v508
        %v557 = vmul.f32 %v556, 1.442695
        %v558 = vpow.pop %v557
        %v559 = vadd.f32 %v558, 1.0
        %v560 = vsel %vm554, %v558, 0.0
        %v561 = vsel %vm555, %v558, 0.0
        %v562 = vadd.f32 %v528, %v560
        %v563 = vadd.f32 %v529, %v561
        %v564 = vrcp.pop %v559
        %v565 = vmul.f32 %v559, %v564
        %v566 = vsub.f32 1.0, %v565
        %v567 = vmul.f32 %v564, %v566
        %v568 = vadd.f32 %v564, %v567
        %vm569 = vweird.f32 %v559
        %vm570 = vweird.f32 %v564
        %vm571 = vmor %vm569, %vm570
        %v572 = vsel %vm571, %v564, %v568
        %v573 = vand.u32 2147483647, %v559
        %vm574 = vcmp.eq.f32.partialorder %v573, 8.507059e+37
        %v575 = vand.u32 %v559, 2147483648
        %v576 = vor.u32 1.1754944e-38, %v575
        %v577 = vsel %vm574, %v576, %v572
        %v578 = vmul.f32 1.0, %v577
        %v579 = vmul.f32 %v562, %v578
        %v580 = vmul.f32 %v563, %v578
        %v581 = vld [vmem:[%s344] sm:$0xff]
        %v582 = vld [vmem:[%s344 + $0x8] sm:$0xff]
        %583 = vmatpush.msra.mxu0 0.0
        %584 = vmatpush.msra.mxu0 0.0
        %585 = vmatpush.msra.mxu0 0.0
        %586 = vmatpush.msra.mxu0 0.0
        %587 = vmatpush.msra.mxu0 0.0
        %588 = vmatpush.msra.mxu0 0.0
        %589 = vmatpush.msra.mxu0 0.0
        %590 = vmatpush.msra.mxu0 0.0
        %591 = vmatpush.msra.mxu0 0.0
        %592 = vmatpush.msra.mxu0 0.0
        %593 = vmatpush.msra.mxu0 0.0
        %594 = vmatpush.msra.mxu0 0.0
        %595 = vmatpush.msra.mxu0 0.0
        %596 = vmatpush.msra.mxu0 0.0
        %597 = vmatpush.msra.mxu0 %v582
        %598 = vmatpush.msra.mxu0 %v581
        %599 = vmatmul.f32.gmra.mxu0 %v386
        %v600 = vpop.f32.mrf.mxu0
        %v601 = vadd.f32 0.0, %v600
        %602 = vmatmul.f32.gmra.mxu0 %v389
        %v603 = vpop.f32.mrf.mxu0
        %v604 = vadd.f32 0.0, %v603
        %605 = vmatmul.f32.gmra.mxu0 %v392
        %v606 = vpop.f32.mrf.mxu0
        %v607 = vadd.f32 0.0, %v606
        %608 = vmatmul.f32.gmra.mxu0 %v395
        %v609 = vpop.f32.mrf.mxu0
        %v610 = vadd.f32 0.0, %v609
        %611 = vdwg.mxu0
        %612 = vmatpush.msra.mxu0 0.0
        %613 = vmatpush.msra.mxu0 0.0
        %614 = vmatpush.msra.mxu0 0.0
        %615 = vmatpush.msra.mxu0 0.0
        %616 = vmatpush.msra.mxu0 0.0
        %617 = vmatpush.msra.mxu0 0.0
        %618 = vmatpush.msra.mxu0 0.0
        %619 = vmatpush.msra.mxu0 0.0
        %620 = vmatpush.msra.mxu0 0.0
        %621 = vmatpush.msra.mxu0 0.0
        %622 = vmatpush.msra.mxu0 0.0
        %623 = vmatpush.msra.mxu0 0.0
        %624 = vmatpush.msra.mxu0 0.0
        %625 = vmatpush.msra.mxu0 0.0
        %626 = vmatpush.msra.mxu0 %v580
        %627 = vmatpush.msra.mxu0 %v579
        %628 = vmatmul.f32.gmra.mxu0 %v386
        %v629 = vpop.f32.mrf.mxu0
        %v630 = vadd.f32 0.0, %v629
        %631 = vmatmul.f32.gmra.mxu0 %v389
        %v632 = vpop.f32.mrf.mxu0
        %v633 = vadd.f32 0.0, %v632
        %634 = vmatmul.f32.gmra.mxu0 %v392
        %v635 = vpop.f32.mrf.mxu0
        %v636 = vadd.f32 0.0, %v635
        %637 = vmatmul.f32.gmra.mxu0 %v395
        %v638 = vpop.f32.mrf.mxu0
        %v639 = vadd.f32 0.0, %v638
        %640 = vdwg.mxu0
        %v641 = vmul.f32 %v601, %v630
        %v642 = vmul.f32 %v604, %v633
        %v643 = vmul.f32 %v607, %v636
        %v644 = vmul.f32 %v610, %v639
        %v645 = vadd.f32 %v641, %v643
        %v646 = vadd.f32 %v642, %v644
        %v647 = vmul.f32 %v601, %v636
        %v648 = vmul.f32 %v604, %v639
        %v649 = vmul.f32 %v607, %v630
        %v650 = vmul.f32 %v610, %v633
        %v651 = vsub.f32 %v647, %v649
        %v652 = vsub.f32 %v648, %v650
        %653 = vmatpush.msra.mxu0 0.0
        %654 = vmatpush.msra.mxu0 0.0
        %655 = vmatpush.msra.mxu0 0.0
        %656 = vmatpush.msra.mxu0 0.0
        %657 = vmatpush.msra.mxu0 0.0
        %658 = vmatpush.msra.mxu0 0.0
        %659 = vmatpush.msra.mxu0 0.0
        %660 = vmatpush.msra.mxu0 0.0
        %661 = vmatpush.msra.mxu0 0.0
        %662 = vmatpush.msra.mxu0 0.0
        %663 = vmatpush.msra.mxu0 0.0
        %664 = vmatpush.msra.mxu0 0.0
        %665 = vmatpush.msra.mxu0 %v652
        %666 = vmatpush.msra.mxu0 %v651
        %667 = vmatpush.msra.mxu0 %v646
        %668 = vmatpush.msra.mxu0 %v645
        %669 = vmatmul.f32.gmra.mxu0 %v471
        %v670 = vpop.f32.mrf.mxu0
        %v671 = vadd.f32 0.0, %v670
        %672 = vmatmul.f32.gmra.mxu0 %v474
        %v673 = vpop.f32.mrf.mxu0
        %v674 = vadd.f32 0.0, %v673
        %675 = vdwg.mxu0
        %676 = vst [vmem:[%s375] sm:$0xff] %v671
        %677 = vst [vmem:[%s375 + $0x8] sm:$0xff] %v674
        %s678 = sand.u32 %s144, 1
        %s679 = sand.u32 %s144, 1
        %s680 = smul.addr %s679, 16
        %s681 = scalar_lea.vmem [#allocation5], %s680
        // Predicated region
        $region155: #{autocorrelation_forward.1} parent=141 // pred_check
          %p682 = pneg %p154
        $region156: #{autocorrelation_forward.1} parent=141 // pred_check_branch
          %684 = sbr.rel (%p682) target = $region158
        $region157: #{autocorrelation_forward.1} parent=141 // pred_region
          %s685 = smul.addr %s16, 8
          %s686 = scalar_lea.vmem %s5, %s685
          // Predicated region
          $region159: #{autocorrelation_forward.1} parent=157 // pred_check
            _
          $region160: #{autocorrelation_forward.1} parent=157 // pred_check_branch
            %688 = sbr.rel (0) target = $region162
          $region161: #{autocorrelation_forward.1} parent=157 // pred_region
            // Predicated region
            $region163: #{autocorrelation_forward.1} parent=161 // pred_check
              _
            $region164: #{autocorrelation_forward.1} parent=161 // pred_check_branch
              %690 = sbr.rel (0) target = $region166
            $region165: #{autocorrelation_forward.1} parent=161 // pred_region
              // Predicated region
              $region178: #{autocorrelation_forward.1} parent=165 // pred_check
                _
              $region179: #{autocorrelation_forward.1} parent=165 // pred_check_branch
                %708 = sbr.rel (0) target = $region181
              $region180: #{autocorrelation_forward.1} parent=165 // pred_region
                loop: start=0, step=1, limit=1
                $region182: #{autocorrelation_forward.1} parent=180 // loop_pre_header
                  _
                $region183: #{autocorrelation_forward.1} parent=180 // loop_header
                  %s710 = sphi 0, %s714
                  %p711 = scmp.ge.s32.totalorder %s710, 1
                  %s715 = sphi %s681, %s681
                  %s716 = sphi %s686, %s686
                $region184: #{autocorrelation_forward.1} parent=180 // loop_header_branch
                  %713 = sbr.rel (%p711) target = $region188
                $region185: #{autocorrelation_forward.1} parent=180 // loop_body
                  %v717 = vld [vmem:[%s715] sm:$0xff]
                  %718 = vst [vmem:[%s716] sm:$0xff] %v717
                  %v719 = vld [vmem:[%s715 + $0x8] sm:$0xff]
                  %720 = vst [vmem:[%s716 + $0x10] sm:$0xff] %v719
                $region186: #{autocorrelation_forward.1} parent=180 // loop_footer
                  %s714 = sadd.s32 1, %s710
                $region187: #{autocorrelation_forward.1} parent=180 // loop_footer_branch
                  %709 = sbr.rel target = $region183
                $region188: #{autocorrelation_forward.1} parent=180 // loop_exit
                  _
              $region181: #{autocorrelation_forward.1} parent=165 // pred_fallthru
                _
              // Predicated region
              $region189: #{autocorrelation_forward.1} parent=165 // pred_check
                _
              $region190: #{autocorrelation_forward.1} parent=165 // pred_check_branch
                %722 = sbr.rel target = $region192
              $region191: #{autocorrelation_forward.1} parent=165 // pred_region
                _
              $region192: #{autocorrelation_forward.1} parent=165 // pred_fallthru
                _
            $region166: #{autocorrelation_forward.1} parent=161 // pred_fallthru
              _
            // Predicated region
            $region167: #{autocorrelation_forward.1} parent=161 // pred_check
              _
            $region168: #{autocorrelation_forward.1} parent=161 // pred_check_branch
              %692 = sbr.rel target = $region170
            $region169: #{autocorrelation_forward.1} parent=161 // pred_region
              %s694 = ssub.s32 256, 1
              loop: start=0, step=1, limit=1
              $region171: #{autocorrelation_forward.1} parent=169 // loop_pre_header
                _
              $region172: #{autocorrelation_forward.1} parent=169 // loop_header
                %s696 = sphi 0, %s700
                %p697 = scmp.ge.s32.totalorder %s696, 1
                %s701 = sphi %s681, %s681
                %s702 = sphi %s686, %s686
              $region173: #{autocorrelation_forward.1} parent=169 // loop_header_branch
                %699 = sbr.rel (%p697) target = $region177
              $region174: #{autocorrelation_forward.1} parent=169 // loop_body
                %v703 = vld [vmem:[%s701] sm:%s694]
                %704 = vst [vmem:[%s702] sm:%s694] %v703
                %v705 = vld [vmem:[%s701 + $0x8] sm:%s694]
                %706 = vst [vmem:[%s702 + $0x10] sm:%s694] %v705
              $region175: #{autocorrelation_forward.1} parent=169 // loop_footer
                %s700 = sadd.s32 1, %s696
              $region176: #{autocorrelation_forward.1} parent=169 // loop_footer_branch
                %695 = sbr.rel target = $region172
              $region177: #{autocorrelation_forward.1} parent=169 // loop_exit
                _
            $region170: #{autocorrelation_forward.1} parent=161 // pred_fallthru
              _
          $region162: #{autocorrelation_forward.1} parent=157 // pred_fallthru
            _
          %723 = vnop
        $region158: #{autocorrelation_forward.1} parent=141 // pred_fallthru
          _
      $region142: #{autocorrelation_forward.1} parent=5 // pred_fallthru
        _
      %p724 = scmp.le.s32.totalorder 2, %s11
      // Predicated region
      $region193: #{autocorrelation_forward.1} parent=5 // pred_check
        %p725 = pneg %p724
      $region194: #{autocorrelation_forward.1} parent=5 // pred_check_branch
        %727 = sbr.rel (%p725) target = $region196
      $region195: #{autocorrelation_forward.1} parent=5 // pred_region
        %s728 = ssub.s32 %s11, 2
        // Predicated region
        $region197: #{autocorrelation_forward.1} parent=195 // pred_check
          %p729 = pneg %p160
        $region198: #{autocorrelation_forward.1} parent=195 // pred_check_branch
          %731 = sbr.rel (%p729) target = $region200
        $region199: #{autocorrelation_forward.1} parent=195 // pred_region
          %s732 = sand.u32 %s145, 1
          %s733 = sand.u32 %s145, 1
          %s734 = smul.addr %s733, 16
          %s735 = scalar_lea.vmem [#allocation5], %s734
        $region200: #{autocorrelation_forward.1} parent=195 // pred_fallthru
          _
      $region196: #{autocorrelation_forward.1} parent=5 // pred_fallthru
        _
    $region6: #{autocorrelation_forward.1} parent=1 // loop_footer
      %s15 = sadd.s32 1, %s11
    $region7: #{autocorrelation_forward.1} parent=1 // loop_footer_branch
      %10 = sbr.rel target = $region3
    $region8: #{autocorrelation_forward.1} parent=1 // loop_exit
      _

</llo_original>
